<compile_context>
chip_gen: v5e
topology: v5e:2x2
jax: 0.10.0
libtpu: 0.0.40
codegen_flags: <defaults>
</compile_context>

<pallas_src>
import jax
import jax.numpy as jnp
from jax import lax
from jax.experimental import pallas as pl
from jax.experimental.pallas import tpu as pltpu

# problem sizes (toy, consistent with the module: x (N,C_IN,H,W), x_past (N,C_SKIP,2H,2W))
C_IN, C_UP, C_SKIP, C_OUT = 4, 4, 4, 4
CCAT = C_UP + C_SKIP
N, H, W = 2, 8, 8
HO, WO = 2 * H, 2 * W                  # up-sampled spatial size
HPAD, WPAD = HO + 2, WO + 2            # +1 zero ring for the 3x3 "same" conv
L = N * HPAD * WPAD                    # flat padded spatial length (648)
LP = ((L + 127) // 128) * 128          # lane-dense length (768)
NSRC = 4 * C_IN + 1 + C_SKIP           # parity-expanded x rows + mask row + x_past rows (21)
NSRC_P = ((NSRC + 7) // 8) * 8         # padded to a sublane multiple (24)
KPACK = 9 * CCAT + 8                   # 9 taps * 8 channels + (bias row + 7 zero rows) = 80


# -----------------------------------------------------------------------------
# Fused kernel: up-conv + scatter + concat + 3x3 conv (+ both biases).
# -----------------------------------------------------------------------------
def _upcatconv_kernel(src_ref, w_cat_ref, w_conv_ref, o_ref, patch_ref):
    # 1) ConvTranspose2d(2,2,s=2) + b_up + 2x2-tap scatter + concat(x_past) as ONE matmul.
    #    `cat` rows = the 8 concat channels, lanes = zero-padded flat (n, I, J) grid.
    cat = jnp.dot(w_cat_ref[...], src_ref[...],
                  preferred_element_type=jnp.float32)                 # (CCAT, LP)

    # 2) K-packed im2col: each 3x3 tap is a lane-roll (XLU) of the padded map.
    #    Wrap-around only pollutes pad-ring / tail lanes, which are cropped later.
    #    Each store is 8-sublane aligned and full-lane-width -> unmasked vst.
    for k in range(9):
        kh, kw = k // 3, k % 3
        s = (kh - 1) * WPAD + (kw - 1)                                 # flat neighbour offset
        rolled = cat if s == 0 else pltpu.roll(cat, shift=(-s) % LP, axis=1)
        patch_ref[8 * k:8 * (k + 1), :] = rolled

    # 3) conv-bias row (all ones) + zero filler rows -> b_conv folded into the matmul.
    #    (single 8-row aligned store; zero rows keep uninitialized scratch out of the dot)
    row = lax.broadcasted_iota(jnp.int32, (KPACK - 9 * CCAT, LP), 0)
    patch_ref[9 * CCAT:KPACK, :] = jnp.where(row == 0, 1.0, 0.0).astype(jnp.float32)

    # 4) whole 3x3 conv (+bias) = ONE K=80 MXU matmul; lane-dense store.
    o_ref[...] = jnp.dot(w_conv_ref[...], patch_ref[...],
                         preferred_element_type=jnp.float32)           # (C_OUT, LP)


# -----------------------------------------------------------------------------
# Wrapper-side (one-time / input-path) layout prep.
# -----------------------------------------------------------------------------
def _prep_params(w_up, b_up, w_conv, b_conv):
    # W_cat: rows = the CCAT concat channels, cols = src rows.
    # top (up channels): w_up[ci, co, a, b] at col ci*4 + a*2 + b, b_up at the mask col.
    w_up_perm = jnp.transpose(w_up, (1, 0, 2, 3)).reshape(C_UP, 4 * C_IN)
    top = jnp.concatenate(
        [w_up_perm, b_up[:, None], jnp.zeros((C_UP, C_SKIP), jnp.float32)], axis=1)
    bot = jnp.concatenate(
        [jnp.zeros((C_SKIP, 4 * C_IN + 1), jnp.float32),
         jnp.eye(C_SKIP, dtype=jnp.float32)], axis=1)
    w_cat = jnp.concatenate([top, bot], axis=0)                        # (CCAT, NSRC)
    w_cat = jnp.pad(w_cat, ((0, 0), (0, NSRC_P - NSRC)))               # (CCAT, NSRC_P)

    # W_conv packed: col = tap*CCAT + ci with tap = kh*3 + kw; b_conv on the ones-row col.
    w_conv_packed = jnp.transpose(w_conv, (0, 2, 3, 1)).reshape(C_OUT, 9 * CCAT)
    w_conv_aug = jnp.concatenate(
        [w_conv_packed, b_conv[:, None],
         jnp.zeros((C_OUT, KPACK - 9 * CCAT - 1), jnp.float32)], axis=1)   # (C_OUT, KPACK)
    return w_cat, w_conv_aug


def _prep_src(x, x_past):
    # Parity-expanded x: row (ci, a, b) holds x[:, ci] scattered to lanes (n, 1+2y+a, 1+2x+b)
    # of the zero-padded (2H+2, 2W+2) grid (lax.pad interior dilation does the scatter).
    x_cf = jnp.transpose(x, (1, 0, 2, 3))                              # (C_IN, N, H, W)
    zero = jnp.array(0.0, x_cf.dtype)
    phases = []
    for a in (0, 1):
        for b in (0, 1):
            phases.append(lax.pad(
                x_cf, zero,
                [(0, 0, 0), (0, 0, 0), (1 + a, 2 - a, 1), (1 + b, 2 - b, 1)]))
    xpar = jnp.stack(phases, axis=1).reshape(4 * C_IN, L)              # (16, L)
    # interior mask (where the up-conv bias applies; the pad ring stays exactly 0)
    mask = jnp.pad(jnp.ones((1, N, HO, WO), jnp.float32),
                   ((0, 0), (0, 0), (1, 1), (1, 1))).reshape(1, L)
    # x_past, channel-first, with the same zero ring
    xpast = jnp.pad(jnp.transpose(x_past, (1, 0, 2, 3)),
                    ((0, 0), (0, 0), (1, 1), (1, 1))).reshape(C_SKIP, L)
    src = jnp.concatenate([xpar, mask, xpast], axis=0)                 # (NSRC, L)
    return jnp.pad(src, ((0, NSRC_P - NSRC), (0, LP - L)))             # (NSRC_P, LP)


# -----------------------------------------------------------------------------
# UpCatC0nv.forward  (NCHW in / NCHW out)
# -----------------------------------------------------------------------------
def up_cat_conv(x, x_past, params):
    w_up, b_up, w_conv, b_conv = params
    src = _prep_src(x, x_past)
    w_cat, w_conv_aug = _prep_params(w_up, b_up, w_conv, b_conv)

    out_flat = pl.pallas_call(
        _upcatconv_kernel,
        out_shape=jax.ShapeDtypeStruct((C_OUT, LP), jnp.float32),
        grid=(1,),
        in_specs=[
            pl.BlockSpec((NSRC_P, LP), lambda i: (0, 0)),
            pl.BlockSpec((CCAT, NSRC_P), lambda i: (0, 0)),
            pl.BlockSpec((C_OUT, KPACK), lambda i: (0, 0)),
        ],
        out_specs=pl.BlockSpec((C_OUT, LP), lambda i: (0, 0)),
        scratch_shapes=[pltpu.VMEM((KPACK, LP), jnp.float32)],
        compiler_params=pltpu.CompilerParams(
            dimension_semantics=("arbitrary",)),
    )(src, w_cat, w_conv_aug)

    # crop the pad ring / lane tail and go back to NCHW (layout plumbing on ~12 KB).
    out = out_flat[:, :L].reshape(C_OUT, N, HPAD, WPAD)[:, :, 1:1 + HO, 1:1 + WO]
    return jnp.transpose(out, (1, 0, 2, 3))


# Pure-JAX reference (independent of the kernel) for the correctness check.
def reference(x, x_past, params):
    w_up, b_up, w_conv, b_conv = params
    w_t = jnp.transpose(jnp.flip(w_up, (2, 3)), (1, 0, 2, 3))          # (C_UP, C_IN, 2, 2)
    up = lax.conv_general_dilated(
        x, w_t, window_strides=(1, 1), padding=((1, 1), (1, 1)),
        lhs_dilation=(2, 2),
        dimension_numbers=("NCHW", "OIHW", "NCHW")) + b_up[None, :, None, None]
    cat = jnp.concatenate([up, x_past], axis=1)
    out = lax.conv_general_dilated(
        cat, w_conv, window_strides=(1, 1), padding=((1, 1), (1, 1)),
        dimension_numbers=("NCHW", "OIHW", "NCHW")) + b_conv[None, :, None, None]
    return out


if __name__ == "__main__":
    key = jax.random.PRNGKey(0)
    k1, k2, k3, k4, k5, k6 = jax.random.split(key, 6)
    x = jax.random.normal(k1, (N, C_IN, H, W), jnp.float32)
    x_past = jax.random.normal(k2, (N, C_SKIP, HO, WO), jnp.float32)
    # deterministic synthetic parameters (no checkpoint load)
    w_up = jax.random.normal(k3, (C_IN, C_UP, 2, 2), jnp.float32) * 0.25
    b_up = jax.random.normal(k4, (C_UP,), jnp.float32) * 0.1
    w_conv = jax.random.normal(k5, (C_OUT, CCAT, 3, 3), jnp.float32) * 0.1
    b_conv = jax.random.normal(k6, (C_OUT,), jnp.float32) * 0.1
    params = (w_up, b_up, w_conv, b_conv)

    out = jax.jit(up_cat_conv)(x, x_past, params)
    out = jax.block_until_ready(out)

    ref = reference(x, x_past, params)
    assert out.shape == (N, C_OUT, HO, WO), out.shape
    assert jnp.allclose(out, ref, atol=1e-4, rtol=1e-4), \
        float(jnp.max(jnp.abs(out - ref)))
    print("KERNEL_OK")
</pallas_src>

<mosaic_0001>
module attributes {stable_mosaic.version = 11 : i64} {
  func.func @_upcatconv_kernel(%arg0: i32, %arg1: memref<24x768xf32, #tpu.memory_space<vmem>>, %arg2: memref<8x24xf32, #tpu.memory_space<vmem>>, %arg3: memref<4x80xf32, #tpu.memory_space<vmem>>, %arg4: memref<4x768xf32, #tpu.memory_space<vmem>>, %arg5: memref<80x768xf32, #tpu.memory_space<vmem>>) attributes {dimension_semantics = [#tpu.dimension_semantics<arbitrary>], iteration_bounds = array<i64: 1>, scalar_prefetch = 0 : i64, scratch_operands = 1 : i64, tpu.core_type = #tpu.core_type<tc>, window_params = [{pipeline_mode = #tpu.pipeline_mode<synchronous>, transform_indices = @transform_0, window_bounds = array<i64: 24, 768>}, {pipeline_mode = #tpu.pipeline_mode<synchronous>, transform_indices = @transform_1, window_bounds = array<i64: 8, 24>}, {pipeline_mode = #tpu.pipeline_mode<synchronous>, transform_indices = @transform_2, window_bounds = array<i64: 4, 80>}, {pipeline_mode = #tpu.pipeline_mode<synchronous>, transform_indices = @transform_3, window_bounds = array<i64: 4, 768>}]} {
    %c0 = arith.constant 0 : index
    %c0_0 = arith.constant 0 : index
    %0 = vector.load %arg2[%c0, %c0_0] : memref<8x24xf32, #tpu.memory_space<vmem>>, vector<8x24xf32>
    %c0_1 = arith.constant 0 : index
    %c0_2 = arith.constant 0 : index
    %1 = vector.load %arg1[%c0_1, %c0_2] : memref<24x768xf32, #tpu.memory_space<vmem>>, vector<24x768xf32>
    %cst = arith.constant dense<0.000000e+00> : vector<8x768xf32>
    %2 = tpu.matmul %0, %1, %cst {dimension_numbers = #tpu.dot_dimension_numbers<[1], [0], [0], [1], [0, 0, 1, 1], [], []>} : vector<8x24xf32>, vector<24x768xf32>, vector<8x768xf32> -> vector<8x768xf32>
    %c19_i32 = arith.constant 19 : i32
    %3 = tpu.dynamic_rotate %2 by %c19_i32 dim 1 : vector<8x768xf32>, i32 -> vector<8x768xf32>
    %c0_3 = arith.constant 0 : index
    %c0_4 = arith.constant 0 : index
    %4 = vector.load %arg5[%c0_3, %c0_4] : memref<80x768xf32, #tpu.memory_space<vmem>>, vector<8x768xf32>
    tpu.vector_store %arg5[%c0_3, %c0_4], %3 {strides = array<i32>} : memref<80x768xf32, #tpu.memory_space<vmem>>, vector<8x768xf32>,
    %c18_i32 = arith.constant 18 : i32
    %5 = tpu.dynamic_rotate %2 by %c18_i32 dim 1 : vector<8x768xf32>, i32 -> vector<8x768xf32>
    %c8 = arith.constant 8 : index
    %c0_5 = arith.constant 0 : index
    %6 = vector.load %arg5[%c8, %c0_5] : memref<80x768xf32, #tpu.memory_space<vmem>>, vector<8x768xf32>
    tpu.vector_store %arg5[%c8, %c0_5], %5 {strides = array<i32>} : memref<80x768xf32, #tpu.memory_space<vmem>>, vector<8x768xf32>,
    %c17_i32 = arith.constant 17 : i32
    %7 = tpu.dynamic_rotate %2 by %c17_i32 dim 1 : vector<8x768xf32>, i32 -> vector<8x768xf32>
    %c16 = arith.constant 16 : index
    %c0_6 = arith.constant 0 : index
    %8 = vector.load %arg5[%c16, %c0_6] : memref<80x768xf32, #tpu.memory_space<vmem>>, vector<8x768xf32>
    tpu.vector_store %arg5[%c16, %c0_6], %7 {strides = array<i32>} : memref<80x768xf32, #tpu.memory_space<vmem>>, vector<8x768xf32>,
    %c1_i32 = arith.constant 1 : i32
    %9 = tpu.dynamic_rotate %2 by %c1_i32 dim 1 : vector<8x768xf32>, i32 -> vector<8x768xf32>
    %c24 = arith.constant 24 : index
    %c0_7 = arith.constant 0 : index
    %10 = vector.load %arg5[%c24, %c0_7] : memref<80x768xf32, #tpu.memory_space<vmem>>, vector<8x768xf32>
    tpu.vector_store %arg5[%c24, %c0_7], %9 {strides = array<i32>} : memref<80x768xf32, #tpu.memory_space<vmem>>, vector<8x768xf32>,
    %c32 = arith.constant 32 : index
    %c0_8 = arith.constant 0 : index
    %11 = vector.load %arg5[%c32, %c0_8] : memref<80x768xf32, #tpu.memory_space<vmem>>, vector<8x768xf32>
    tpu.vector_store %arg5[%c32, %c0_8], %2 {strides = array<i32>} : memref<80x768xf32, #tpu.memory_space<vmem>>, vector<8x768xf32>,
    %c767_i32 = arith.constant 767 : i32
    %12 = tpu.dynamic_rotate %2 by %c767_i32 dim 1 : vector<8x768xf32>, i32 -> vector<8x768xf32>
    %c40 = arith.constant 40 : index
    %c0_9 = arith.constant 0 : index
    %13 = vector.load %arg5[%c40, %c0_9] : memref<80x768xf32, #tpu.memory_space<vmem>>, vector<8x768xf32>
    tpu.vector_store %arg5[%c40, %c0_9], %12 {strides = array<i32>} : memref<80x768xf32, #tpu.memory_space<vmem>>, vector<8x768xf32>,
    %c751_i32 = arith.constant 751 : i32
    %14 = tpu.dynamic_rotate %2 by %c751_i32 dim 1 : vector<8x768xf32>, i32 -> vector<8x768xf32>
    %c48 = arith.constant 48 : index
    %c0_10 = arith.constant 0 : index
    %15 = vector.load %arg5[%c48, %c0_10] : memref<80x768xf32, #tpu.memory_space<vmem>>, vector<8x768xf32>
    tpu.vector_store %arg5[%c48, %c0_10], %14 {strides = array<i32>} : memref<80x768xf32, #tpu.memory_space<vmem>>, vector<8x768xf32>,
    %c750_i32 = arith.constant 750 : i32
    %16 = tpu.dynamic_rotate %2 by %c750_i32 dim 1 : vector<8x768xf32>, i32 -> vector<8x768xf32>
    %c56 = arith.constant 56 : index
    %c0_11 = arith.constant 0 : index
    %17 = vector.load %arg5[%c56, %c0_11] : memref<80x768xf32, #tpu.memory_space<vmem>>, vector<8x768xf32>
    tpu.vector_store %arg5[%c56, %c0_11], %16 {strides = array<i32>} : memref<80x768xf32, #tpu.memory_space<vmem>>, vector<8x768xf32>,
    %c749_i32 = arith.constant 749 : i32
    %18 = tpu.dynamic_rotate %2 by %c749_i32 dim 1 : vector<8x768xf32>, i32 -> vector<8x768xf32>
    %c64 = arith.constant 64 : index
    %c0_12 = arith.constant 0 : index
    %19 = vector.load %arg5[%c64, %c0_12] : memref<80x768xf32, #tpu.memory_space<vmem>>, vector<8x768xf32>
    tpu.vector_store %arg5[%c64, %c0_12], %18 {strides = array<i32>} : memref<80x768xf32, #tpu.memory_space<vmem>>, vector<8x768xf32>,
    %20 = tpu.iota {dimensions = array<i32: 0>} : vector<8x768xi32>
    %c0_i32 = arith.constant 0 : i32
    %21 = vector.broadcast %c0_i32 : i32 to vector<8x768xi32>
    %22 = arith.cmpi eq, %20, %21 : vector<8x768xi32>
    %cst_13 = arith.constant 1.000000e+00 : f32
    %cst_14 = arith.constant 0.000000e+00 : f32
    %23 = vector.broadcast %cst_13 : f32 to vector<8x768xf32>
    %24 = vector.broadcast %cst_14 : f32 to vector<8x768xf32>
    %25 = arith.select %22, %23, %24 : vector<8x768xi1>, vector<8x768xf32>
    %c72 = arith.constant 72 : index
    %c0_15 = arith.constant 0 : index
    %26 = vector.load %arg5[%c72, %c0_15] : memref<80x768xf32, #tpu.memory_space<vmem>>, vector<8x768xf32>
    tpu.vector_store %arg5[%c72, %c0_15], %25 {strides = array<i32>} : memref<80x768xf32, #tpu.memory_space<vmem>>, vector<8x768xf32>,
    %c0_16 = arith.constant 0 : index
    %c0_17 = arith.constant 0 : index
    %27 = vector.load %arg3[%c0_16, %c0_17] : memref<4x80xf32, #tpu.memory_space<vmem>>, vector<4x80xf32>
    %c0_18 = arith.constant 0 : index
    %c0_19 = arith.constant 0 : index
    %28 = vector.load %arg5[%c0_18, %c0_19] : memref<80x768xf32, #tpu.memory_space<vmem>>, vector<80x768xf32>
    %cst_20 = arith.constant dense<0.000000e+00> : vector<4x768xf32>
    %29 = tpu.matmul %27, %28, %cst_20 {dimension_numbers = #tpu.dot_dimension_numbers<[1], [0], [0], [1], [0, 0, 1, 1], [], []>} : vector<4x80xf32>, vector<80x768xf32>, vector<4x768xf32> -> vector<4x768xf32>
    %c0_21 = arith.constant 0 : index
    %c0_22 = arith.constant 0 : index
    %30 = vector.load %arg4[%c0_21, %c0_22] : memref<4x768xf32, #tpu.memory_space<vmem>>, vector<4x768xf32>
    tpu.vector_store %arg4[%c0_21, %c0_22], %29 {strides = array<i32>} : memref<4x768xf32, #tpu.memory_space<vmem>>, vector<4x768xf32>,
    return
  }
  func.func @transform_0(%arg0: i32) -> (i32, i32) {
    %c0_i32 = arith.constant 0 : i32
    %c0_i32_0 = arith.constant 0 : i32
    %c0_i32_1 = arith.constant 0 : i32
    return %c0_i32, %c0_i32_0 : i32, i32
  }
  func.func @transform_1(%arg0: i32) -> (i32, i32) {
    %c0_i32 = arith.constant 0 : i32
    %c0_i32_0 = arith.constant 0 : i32
    %c0_i32_1 = arith.constant 0 : i32
    return %c0_i32, %c0_i32_0 : i32, i32
  }
  func.func @transform_2(%arg0: i32) -> (i32, i32) {
    %c0_i32 = arith.constant 0 : i32
    %c0_i32_0 = arith.constant 0 : i32
    %c0_i32_1 = arith.constant 0 : i32
    return %c0_i32, %c0_i32_0 : i32, i32
  }
  func.func @transform_3(%arg0: i32) -> (i32, i32) {
    %c0_i32 = arith.constant 0 : i32
    %c0_i32_0 = arith.constant 0 : i32
    %c0_i32_1 = arith.constant 0 : i32
    return %c0_i32, %c0_i32_0 : i32, i32
  }
}

</mosaic_0001>

<llo_original>
// kernel: up_cat_conv.1
$region0: #{up_cat_conv.1}
  #allocation0 [shape = 'u32[]', space=smem, size = 0x4, offset = 0x4, fixed_abs, tag = 'smem constant byte address 0x4 - core index']
  #allocation1 [shape = 'u32[72,128]{1,0:T(1,128)}', space=vmem, size = 0x9000, scoped, tag = 'internal scratch']
  #allocation2 [shape = 'f32[80,768]{1,0:T(8,128)}', space=vmem, size = 0x3c000, scoped, tag = 'scratch operand']
  %s0 = inlined_call_operand.vmem [shape: f32[24,768], index: 0, kind: input, shape index: {}]
  %s1 = inlined_call_operand.vmem [shape: f32[8,24], index: 1, kind: input, shape index: {}]
  %s2 = inlined_call_operand.vmem [shape: f32[4,80], index: 2, kind: input, shape index: {}]
  %s3 = inlined_call_operand.vmem [shape: f32[4,768], index: 3, kind: output, shape index: {}]
  %s4 = sld [smem:[#allocation0]]
  $region22: #{up_cat_conv.1} parent=0
    _
  %s6 = ssub.s32 1, %s4
  %s7 = scalar_select 0, %s6, %s4
  // Predicated region
  $region2: #{up_cat_conv.1} parent=0 // pred_check
    _
  $region3: #{up_cat_conv.1} parent=0 // pred_check_branch
    %9 = sbr.rel (0) target = $region5
  $region4: #{up_cat_conv.1} parent=0 // pred_region
    _
  $region5: #{up_cat_conv.1} parent=0 // pred_fallthru
    _
  // Predicated region
  $region6: #{up_cat_conv.1} parent=0 // pred_check
    _
  $region7: #{up_cat_conv.1} parent=0 // pred_check_branch
    %11 = sbr.rel (0) target = $region9
  $region8: #{up_cat_conv.1} parent=0 // pred_region
    _
  $region9: #{up_cat_conv.1} parent=0 // pred_fallthru
    _
  // Predicated region
  $region10: #{up_cat_conv.1} parent=0 // pred_check
    _
  $region11: #{up_cat_conv.1} parent=0 // pred_check_branch
    %13 = sbr.rel (0) target = $region13
  $region12: #{up_cat_conv.1} parent=0 // pred_region
    _
  $region13: #{up_cat_conv.1} parent=0 // pred_fallthru
    _
  %v14 = vld [vmem:[%s1] sm:$0xff]
  %v15 = vld [vmem:[%s0] sm:$0xff]
  %v16 = vld [vmem:[%s0 + $0x8] sm:$0xff]
  %v17 = vld [vmem:[%s0 + $0x10] sm:$0xff]
  %v18 = vld [vmem:[%s0 + $0x18] sm:$0xff]
  %v19 = vld [vmem:[%s0 + $0x20] sm:$0xff]
  %v20 = vld [vmem:[%s0 + $0x28] sm:$0xff]
  %v21 = vld [vmem:[%s0 + $0x30] sm:$0xff]
  %v22 = vld [vmem:[%s0 + $0x38] sm:$0xff]
  %v23 = vld [vmem:[%s0 + $0x40] sm:$0xff]
  %v24 = vld [vmem:[%s0 + $0x48] sm:$0xff]
  %v25 = vld [vmem:[%s0 + $0x50] sm:$0xff]
  %v26 = vld [vmem:[%s0 + $0x58] sm:$0xff]
  %v27 = vld [vmem:[%s0 + $0x60] sm:$0xff]
  %v28 = vld [vmem:[%s0 + $0x68] sm:$0xff]
  %v29 = vld [vmem:[%s0 + $0x70] sm:$0xff]
  %v30 = vld [vmem:[%s0 + $0x78] sm:$0xff]
  %v31 = vld [vmem:[%s0 + $0x80] sm:$0xff]
  %v32 = vld [vmem:[%s0 + $0x88] sm:$0xff]
  %vm33 = vcmask 195584
  %v35 = vsel %vm33, %v14, 0
  %37 = vmatpush.msra.mxu0 0.0
  %38 = vmatpush.msra.mxu0 0.0
  %39 = vmatpush.msra.mxu0 0.0
  %40 = vmatpush.msra.mxu0 0.0
  %41 = vmatpush.msra.mxu0 0.0
  %42 = vmatpush.msra.mxu0 0.0
  %43 = vmatpush.msra.mxu0 0.0
  %44 = vmatpush.msra.mxu0 0.0
  %45 = vmatpush.msra.mxu0 0.0
  %46 = vmatpush.msra.mxu0 0.0
  %47 = vmatpush.msra.mxu0 0.0
  %48 = vmatpush.msra.mxu0 0.0
  %49 = vmatpush.msra.mxu0 0.0
  %50 = vmatpush.msra.mxu0 %v27
  %51 = vmatpush.msra.mxu0 %v21
  %52 = vmatpush.msra.mxu0 %v15
  %53 = vmatmul.f32.gmra.mxu0 %v35
  %v54 = vpop.f32.mrf.mxu0
  %v55 = vadd.f32 0.0, %v54
  %56 = vdwg.mxu0
  %57 = vmatpush.msra.mxu0 0.0
  %58 = vmatpush.msra.mxu0 0.0
  %59 = vmatpush.msra.mxu0 0.0
  %60 = vmatpush.msra.mxu0 0.0
  %61 = vmatpush.msra.mxu0 0.0
  %62 = vmatpush.msra.mxu0 0.0
  %63 = vmatpush.msra.mxu0 0.0
  %64 = vmatpush.msra.mxu0 0.0
  %65 = vmatpush.msra.mxu0 0.0
  %66 = vmatpush.msra.mxu0 0.0
  %67 = vmatpush.msra.mxu0 0.0
  %68 = vmatpush.msra.mxu0 0.0
  %69 = vmatpush.msra.mxu0 0.0
  %70 = vmatpush.msra.mxu0 %v28
  %71 = vmatpush.msra.mxu0 %v22
  %72 = vmatpush.msra.mxu0 %v16
  %73 = vmatmul.f32.gmra.mxu0 %v35
  %v74 = vpop.f32.mrf.mxu0
  %v75 = vadd.f32 0.0, %v74
  %76 = vdwg.mxu0
  %77 = vmatpush.msra.mxu0 0.0
  %78 = vmatpush.msra.mxu0 0.0
  %79 = vmatpush.msra.mxu0 0.0
  %80 = vmatpush.msra.mxu0 0.0
  %81 = vmatpush.msra.mxu0 0.0
  %82 = vmatpush.msra.mxu0 0.0
  %83 = vmatpush.msra.mxu0 0.0
  %84 = vmatpush.msra.mxu0 0.0
  %85 = vmatpush.msra.mxu0 0.0
  %86 = vmatpush.msra.mxu0 0.0
  %87 = vmatpush.msra.mxu0 0.0
  %88 = vmatpush.msra.mxu0 0.0
  %89 = vmatpush.msra.mxu0 0.0
  %90 = vmatpush.msra.mxu0 %v29
  %91 = vmatpush.msra.mxu0 %v23
  %92 = vmatpush.msra.mxu0 %v17
  %93 = vmatmul.f32.gmra.mxu0 %v35
  %v94 = vpop.f32.mrf.mxu0
  %v95 = vadd.f32 0.0, %v94
  %96 = vdwg.mxu0
  %97 = vmatpush.msra.mxu0 0.0
  %98 = vmatpush.msra.mxu0 0.0
  %99 = vmatpush.msra.mxu0 0.0
  %100 = vmatpush.msra.mxu0 0.0
  %101 = vmatpush.msra.mxu0 0.0
  %102 = vmatpush.msra.mxu0 0.0
  %103 = vmatpush.msra.mxu0 0.0
  %104 = vmatpush.msra.mxu0 0.0
  %105 = vmatpush.msra.mxu0 0.0
  %106 = vmatpush.msra.mxu0 0.0
  %107 = vmatpush.msra.mxu0 0.0
  %108 = vmatpush.msra.mxu0 0.0
  %109 = vmatpush.msra.mxu0 0.0
  %110 = vmatpush.msra.mxu0 %v30
  %111 = vmatpush.msra.mxu0 %v24
  %112 = vmatpush.msra.mxu0 %v18
  %113 = vmatmul.f32.gmra.mxu0 %v35
  %v114 = vpop.f32.mrf.mxu0
  %v115 = vadd.f32 0.0, %v114
  %116 = vdwg.mxu0
  %117 = vmatpush.msra.mxu0 0.0
  %118 = vmatpush.msra.mxu0 0.0
  %119 = vmatpush.msra.mxu0 0.0
  %120 = vmatpush.msra.mxu0 0.0
  %121 = vmatpush.msra.mxu0 0.0
  %122 = vmatpush.msra.mxu0 0.0
  %123 = vmatpush.msra.mxu0 0.0
  %124 = vmatpush.msra.mxu0 0.0
  %125 = vmatpush.msra.mxu0 0.0
  %126 = vmatpush.msra.mxu0 0.0
  %127 = vmatpush.msra.mxu0 0.0
  %128 = vmatpush.msra.mxu0 0.0
  %129 = vmatpush.msra.mxu0 0.0
  %130 = vmatpush.msra.mxu0 %v31
  %131 = vmatpush.msra.mxu0 %v25
  %132 = vmatpush.msra.mxu0 %v19
  %133 = vmatmul.f32.gmra.mxu0 %v35
  %v134 = vpop.f32.mrf.mxu0
  %v135 = vadd.f32 0.0, %v134
  %136 = vdwg.mxu0
  %137 = vmatpush.msra.mxu0 0.0
  %138 = vmatpush.msra.mxu0 0.0
  %139 = vmatpush.msra.mxu0 0.0
  %140 = vmatpush.msra.mxu0 0.0
  %141 = vmatpush.msra.mxu0 0.0
  %142 = vmatpush.msra.mxu0 0.0
  %143 = vmatpush.msra.mxu0 0.0
  %144 = vmatpush.msra.mxu0 0.0
  %145 = vmatpush.msra.mxu0 0.0
  %146 = vmatpush.msra.mxu0 0.0
  %147 = vmatpush.msra.mxu0 0.0
  %148 = vmatpush.msra.mxu0 0.0
  %149 = vmatpush.msra.mxu0 0.0
  %150 = vmatpush.msra.mxu0 %v32
  %151 = vmatpush.msra.mxu0 %v26
  %152 = vmatpush.msra.mxu0 %v20
  %153 = vmatmul.f32.gmra.mxu0 %v35
  %v154 = vpop.f32.mrf.mxu0
  %v155 = vadd.f32 0.0, %v154
  %156 = vdwg.mxu0
  %157 = vrot.lane.b32.xlu0 %v55, 19
  %v158 = vpop.permute.xlu0 %157
  %159 = vrot.lane.b32.xlu0 %v75, 19
  %v160 = vpop.permute.xlu0 %159
  %161 = vrot.lane.b32.xlu0 %v95, 19
  %v162 = vpop.permute.xlu0 %161
  %163 = vrot.lane.b32.xlu0 %v115, 19
  %v164 = vpop.permute.xlu0 %163
  %165 = vrot.lane.b32.xlu0 %v135, 19
  %v166 = vpop.permute.xlu0 %165
  %167 = vrot.lane.b32.xlu0 %v155, 19
  %v168 = vpop.permute.xlu0 %167
  %v169 = vlaneseq
  %v170 = vand.u32 %v169, 127
  %vm171 = vcmp.lt.s32.totalorder %v170, 19
  %v172 = vsel %vm171, %v166, %v168
  %v173 = vsel %vm171, %v164, %v166
  %v174 = vsel %vm171, %v162, %v164
  %v175 = vsel %vm171, %v160, %v162
  %v176 = vsel %vm171, %v158, %v160
  %v177 = vsel %vm171, %v168, %v158
  %178 = vst [vmem:[#allocation2] sm:$0xff] %v177
  %179 = vst [vmem:[#allocation2 + $0x8] sm:$0xff] %v176
  %180 = vst [vmem:[#allocation2 + $0x10] sm:$0xff] %v175
  %181 = vst [vmem:[#allocation2 + $0x18] sm:$0xff] %v174
  %182 = vst [vmem:[#allocation2 + $0x20] sm:$0xff] %v173
  %183 = vst [vmem:[#allocation2 + $0x28] sm:$0xff] %v172
  %184 = vrot.lane.b32.xlu0 %v55, 18
  %v185 = vpop.permute.xlu0 %184
  %186 = vrot.lane.b32.xlu0 %v75, 18
  %v187 = vpop.permute.xlu0 %186
  %188 = vrot.lane.b32.xlu0 %v95, 18
  %v189 = vpop.permute.xlu0 %188
  %190 = vrot.lane.b32.xlu0 %v115, 18
  %v191 = vpop.permute.xlu0 %190
  %192 = vrot.lane.b32.xlu0 %v135, 18
  %v193 = vpop.permute.xlu0 %192
  %194 = vrot.lane.b32.xlu0 %v155, 18
  %v195 = vpop.permute.xlu0 %194
  %vm196 = vcmp.lt.s32.totalorder %v170, 18
  %v197 = vsel %vm196, %v193, %v195
  %v198 = vsel %vm196, %v191, %v193
  %v199 = vsel %vm196, %v189, %v191
  %v200 = vsel %vm196, %v187, %v189
  %v201 = vsel %vm196, %v185, %v187
  %v202 = vsel %vm196, %v195, %v185
  %203 = vst [vmem:[#allocation2 + $0x30] sm:$0xff] %v202
  %204 = vst [vmem:[#allocation2 + $0x38] sm:$0xff] %v201
  %205 = vst [vmem:[#allocation2 + $0x40] sm:$0xff] %v200
  %206 = vst [vmem:[#allocation2 + $0x48] sm:$0xff] %v199
  %207 = vst [vmem:[#allocation2 + $0x50] sm:$0xff] %v198
  %208 = vst [vmem:[#allocation2 + $0x58] sm:$0xff] %v197
  %209 = vrot.lane.b32.xlu0 %v55, 17
  %v210 = vpop.permute.xlu0 %209
  %211 = vrot.lane.b32.xlu0 %v75, 17
  %v212 = vpop.permute.xlu0 %211
  %213 = vrot.lane.b32.xlu0 %v95, 17
  %v214 = vpop.permute.xlu0 %213
  %215 = vrot.lane.b32.xlu0 %v115, 17
  %v216 = vpop.permute.xlu0 %215
  %217 = vrot.lane.b32.xlu0 %v135, 17
  %v218 = vpop.permute.xlu0 %217
  %219 = vrot.lane.b32.xlu0 %v155, 17
  %v220 = vpop.permute.xlu0 %219
  %vm221 = vcmp.lt.s32.totalorder %v170, 17
  %v222 = vsel %vm221, %v218, %v220
  %v223 = vsel %vm221, %v216, %v218
  %v224 = vsel %vm221, %v214, %v216
  %v225 = vsel %vm221, %v212, %v214
  %v226 = vsel %vm221, %v210, %v212
  %v227 = vsel %vm221, %v220, %v210
  %228 = vst [vmem:[#allocation2 + $0x60] sm:$0xff] %v227
  %229 = vst [vmem:[#allocation2 + $0x68] sm:$0xff] %v226
  %230 = vst [vmem:[#allocation2 + $0x70] sm:$0xff] %v225
  %231 = vst [vmem:[#allocation2 + $0x78] sm:$0xff] %v224
  %232 = vst [vmem:[#allocation2 + $0x80] sm:$0xff] %v223
  %233 = vst [vmem:[#allocation2 + $0x88] sm:$0xff] %v222
  %234 = vrot.lane.b32.xlu0 %v55, 1
  %v235 = vpop.permute.xlu0 %234
  %236 = vrot.lane.b32.xlu0 %v75, 1
  %v237 = vpop.permute.xlu0 %236
  %238 = vrot.lane.b32.xlu0 %v95, 1
  %v239 = vpop.permute.xlu0 %238
  %240 = vrot.lane.b32.xlu0 %v115, 1
  %v241 = vpop.permute.xlu0 %240
  %242 = vrot.lane.b32.xlu0 %v135, 1
  %v243 = vpop.permute.xlu0 %242
  %244 = vrot.lane.b32.xlu0 %v155, 1
  %v245 = vpop.permute.xlu0 %244
  %vm246 = vcmp.lt.s32.totalorder %v170, 1
  %v247 = vsel %vm246, %v243, %v245
  %v248 = vsel %vm246, %v241, %v243
  %v249 = vsel %vm246, %v239, %v241
  %v250 = vsel %vm246, %v237, %v239
  %v251 = vsel %vm246, %v235, %v237
  %v252 = vsel %vm246, %v245, %v235
  %253 = vst [vmem:[#allocation2 + $0x90] sm:$0xff] %v252
  %254 = vst [vmem:[#allocation2 + $0x98] sm:$0xff] %v251
  %255 = vst [vmem:[#allocation2 + $0xa0] sm:$0xff] %v250
  %256 = vst [vmem:[#allocation2 + $0xa8] sm:$0xff] %v249
  %257 = vst [vmem:[#allocation2 + $0xb0] sm:$0xff] %v248
  %258 = vst [vmem:[#allocation2 + $0xb8] sm:$0xff] %v247
  %259 = vst [vmem:[#allocation2 + $0xc0] sm:$0xff] %v55
  %260 = vst [vmem:[#allocation2 + $0xc8] sm:$0xff] %v75
  %261 = vst [vmem:[#allocation2 + $0xd0] sm:$0xff] %v95
  %262 = vst [vmem:[#allocation2 + $0xd8] sm:$0xff] %v115
  %263 = vst [vmem:[#allocation2 + $0xe0] sm:$0xff] %v135
  %264 = vst [vmem:[#allocation2 + $0xe8] sm:$0xff] %v155
  %265 = vrot.lane.b32.xlu0 %v55, 127
  %v266 = vpop.permute.xlu0 %265
  %267 = vrot.lane.b32.xlu0 %v75, 127
  %v268 = vpop.permute.xlu0 %267
  %269 = vrot.lane.b32.xlu0 %v95, 127
  %v270 = vpop.permute.xlu0 %269
  %271 = vrot.lane.b32.xlu0 %v115, 127
  %v272 = vpop.permute.xlu0 %271
  %273 = vrot.lane.b32.xlu0 %v135, 127
  %v274 = vpop.permute.xlu0 %273
  %275 = vrot.lane.b32.xlu0 %v155, 127
  %v276 = vpop.permute.xlu0 %275
  %vm277 = vcmp.lt.s32.totalorder %v170, 127
  %v278 = vsel %vm277, %v274, %v276
  %v279 = vsel %vm277, %v272, %v274
  %v280 = vsel %vm277, %v270, %v272
  %v281 = vsel %vm277, %v268, %v270
  %v282 = vsel %vm277, %v266, %v268
  %v283 = vsel %vm277, %v276, %v266
  %284 = vst [vmem:[#allocation2 + $0xf0] sm:$0xff] %v282
  %285 = vst [vmem:[#allocation2 + $0xf8] sm:$0xff] %v281
  %286 = vst [vmem:[#allocation2 + $0x100] sm:$0xff] %v280
  %287 = vst [vmem:[#allocation2 + $0x108] sm:$0xff] %v279
  %288 = vst [vmem:[#allocation2 + $0x110] sm:$0xff] %v278
  %289 = vst [vmem:[#allocation2 + $0x118] sm:$0xff] %v283
  %290 = vrot.lane.b32.xlu0 %v55, 111
  %v291 = vpop.permute.xlu0 %290
  %292 = vrot.lane.b32.xlu0 %v75, 111
  %v293 = vpop.permute.xlu0 %292
  %294 = vrot.lane.b32.xlu0 %v95, 111
  %v295 = vpop.permute.xlu0 %294
  %296 = vrot.lane.b32.xlu0 %v115, 111
  %v297 = vpop.permute.xlu0 %296
  %298 = vrot.lane.b32.xlu0 %v135, 111
  %v299 = vpop.permute.xlu0 %298
  %300 = vrot.lane.b32.xlu0 %v155, 111
  %v301 = vpop.permute.xlu0 %300
  %vm302 = vcmp.lt.s32.totalorder %v170, 111
  %v303 = vsel %vm302, %v299, %v301
  %v304 = vsel %vm302, %v297, %v299
  %v305 = vsel %vm302, %v295, %v297
  %v306 = vsel %vm302, %v293, %v295
  %v307 = vsel %vm302, %v291, %v293
  %v308 = vsel %vm302, %v301, %v291
  %309 = vst [vmem:[#allocation2 + $0x120] sm:$0xff] %v307
  %310 = vst [vmem:[#allocation2 + $0x128] sm:$0xff] %v306
  %311 = vst [vmem:[#allocation2 + $0x130] sm:$0xff] %v305
  %312 = vst [vmem:[#allocation2 + $0x138] sm:$0xff] %v304
  %313 = vst [vmem:[#allocation2 + $0x140] sm:$0xff] %v303
  %314 = vst [vmem:[#allocation2 + $0x148] sm:$0xff] %v308
  %315 = vrot.lane.b32.xlu0 %v55, 110
  %v316 = vpop.permute.xlu0 %315
  %317 = vrot.lane.b32.xlu0 %v75, 110
  %v318 = vpop.permute.xlu0 %317
  %319 = vrot.lane.b32.xlu0 %v95, 110
  %v320 = vpop.permute.xlu0 %319
  %321 = vrot.lane.b32.xlu0 %v115, 110
  %v322 = vpop.permute.xlu0 %321
  %323 = vrot.lane.b32.xlu0 %v135, 110
  %v324 = vpop.permute.xlu0 %323
  %325 = vrot.lane.b32.xlu0 %v155, 110
  %v326 = vpop.permute.xlu0 %325
  %vm327 = vcmp.lt.s32.totalorder %v170, 110
  %v328 = vsel %vm327, %v324, %v326
  %v329 = vsel %vm327, %v322, %v324
  %v330 = vsel %vm327, %v320, %v322
  %v331 = vsel %vm327, %v318, %v320
  %v332 = vsel %vm327, %v316, %v318
  %v333 = vsel %vm327, %v326, %v316
  %334 = vst [vmem:[#allocation2 + $0x150] sm:$0xff] %v332
  %335 = vst [vmem:[#allocation2 + $0x158] sm:$0xff] %v331
  %336 = vst [vmem:[#allocation2 + $0x160] sm:$0xff] %v330
  %337 = vst [vmem:[#allocation2 + $0x168] sm:$0xff] %v329
  %338 = vst [vmem:[#allocation2 + $0x170] sm:$0xff] %v328
  %339 = vst [vmem:[#allocation2 + $0x178] sm:$0xff] %v333
  %340 = vrot.lane.b32.xlu0 %v55, 109
  %v341 = vpop.permute.xlu0 %340
  %342 = vrot.lane.b32.xlu0 %v75, 109
  %v343 = vpop.permute.xlu0 %342
  %344 = vrot.lane.b32.xlu0 %v95, 109
  %v345 = vpop.permute.xlu0 %344
  %346 = vrot.lane.b32.xlu0 %v115, 109
  %v347 = vpop.permute.xlu0 %346
  %348 = vrot.lane.b32.xlu0 %v135, 109
  %v349 = vpop.permute.xlu0 %348
  %350 = vrot.lane.b32.xlu0 %v155, 109
  %v351 = vpop.permute.xlu0 %350
  %vm352 = vcmp.lt.s32.totalorder %v170, 109
  %v353 = vsel %vm352, %v349, %v351
  %v354 = vsel %vm352, %v347, %v349
  %v355 = vsel %vm352, %v345, %v347
  %v356 = vsel %vm352, %v343, %v345
  %v357 = vsel %vm352, %v341, %v343
  %v358 = vsel %vm352, %v351, %v341
  %359 = vst [vmem:[#allocation2 + $0x180] sm:$0xff] %v357
  %360 = vst [vmem:[#allocation2 + $0x188] sm:$0xff] %v356
  %361 = vst [vmem:[#allocation2 + $0x190] sm:$0xff] %v355
  %362 = vst [vmem:[#allocation2 + $0x198] sm:$0xff] %v354
  %363 = vst [vmem:[#allocation2 + $0x1a0] sm:$0xff] %v353
  %364 = vst [vmem:[#allocation2 + $0x1a8] sm:$0xff] %v358
  %v365 = vlaneseq
  %v366 = vshrl.u32 %v365, 7
  %vm367 = vcmp.eq.s32.totalorder %v366, 0
  %v368 = vsel %vm367, 1.0, 0.0
  %369 = vst [vmem:[#allocation2 + $0x1b0] sm:$0xff] %v368
  %370 = vst [vmem:[#allocation2 + $0x1b8] sm:$0xff] %v368
  %371 = vst [vmem:[#allocation2 + $0x1c0] sm:$0xff] %v368
  %372 = vst [vmem:[#allocation2 + $0x1c8] sm:$0xff] %v368
  %373 = vst [vmem:[#allocation2 + $0x1d0] sm:$0xff] %v368
  %374 = vst [vmem:[#allocation2 + $0x1d8] sm:$0xff] %v368
  %v375 = vld [vmem:[%s2] sm:$0xf]
  %v376 = vld [vmem:[#allocation2] sm:$0xff]
  %v377 = vld [vmem:[#allocation2 + $0x8] sm:$0xff]
  %v378 = vld [vmem:[#allocation2 + $0x10] sm:$0xff]
  %v379 = vld [vmem:[#allocation2 + $0x18] sm:$0xff]
  %v380 = vld [vmem:[#allocation2 + $0x20] sm:$0xff]
  %v381 = vld [vmem:[#allocation2 + $0x28] sm:$0xff]
  %v382 = vld [vmem:[#allocation2 + $0x30] sm:$0xff]
  %v383 = vld [vmem:[#allocation2 + $0x38] sm:$0xff]
  %v384 = vld [vmem:[#allocation2 + $0x40] sm:$0xff]
  %v385 = vld [vmem:[#allocation2 + $0x48] sm:$0xff]
  %v386 = vld [vmem:[#allocation2 + $0x50] sm:$0xff]
  %v387 = vld [vmem:[#allocation2 + $0x58] sm:$0xff]
  %v388 = vld [vmem:[#allocation2 + $0x60] sm:$0xff]
  %v389 = vld [vmem:[#allocation2 + $0x68] sm:$0xff]
  %v390 = vld [vmem:[#allocation2 + $0x70] sm:$0xff]
  %v391 = vld [vmem:[#allocation2 + $0x78] sm:$0xff]
  %v392 = vld [vmem:[#allocation2 + $0x80] sm:$0xff]
  %v393 = vld [vmem:[#allocation2 + $0x88] sm:$0xff]
  %v394 = vld [vmem:[#allocation2 + $0x90] sm:$0xff]
  %v395 = vld [vmem:[#allocation2 + $0x98] sm:$0xff]
  %v396 = vld [vmem:[#allocation2 + $0xa0] sm:$0xff]
  %v397 = vld [vmem:[#allocation2 + $0xa8] sm:$0xff]
  %v398 = vld [vmem:[#allocation2 + $0xb0] sm:$0xff]
  %v399 = vld [vmem:[#allocation2 + $0xb8] sm:$0xff]
  %v400 = vld [vmem:[#allocation2 + $0xc0] sm:$0xff]
  %v401 = vld [vmem:[#allocation2 + $0xc8] sm:$0xff]
  %v402 = vld [vmem:[#allocation2 + $0xd0] sm:$0xff]
  %v403 = vld [vmem:[#allocation2 + $0xd8] sm:$0xff]
  %v404 = vld [vmem:[#allocation2 + $0xe0] sm:$0xff]
  %v405 = vld [vmem:[#allocation2 + $0xe8] sm:$0xff]
  %v406 = vld [vmem:[#allocation2 + $0xf0] sm:$0xff]
  %v407 = vld [vmem:[#allocation2 + $0xf8] sm:$0xff]
  %v408 = vld [vmem:[#allocation2 + $0x100] sm:$0xff]
  %v409 = vld [vmem:[#allocation2 + $0x108] sm:$0xff]
  %v410 = vld [vmem:[#allocation2 + $0x110] sm:$0xff]
  %v411 = vld [vmem:[#allocation2 + $0x118] sm:$0xff]
  %v412 = vld [vmem:[#allocation2 + $0x120] sm:$0xff]
  %v413 = vld [vmem:[#allocation2 + $0x128] sm:$0xff]
  %v414 = vld [vmem:[#allocation2 + $0x130] sm:$0xff]
  %v415 = vld [vmem:[#allocation2 + $0x138] sm:$0xff]
  %v416 = vld [vmem:[#allocation2 + $0x140] sm:$0xff]
  %v417 = vld [vmem:[#allocation2 + $0x148] sm:$0xff]
  %v418 = vld [vmem:[#allocation2 + $0x150] sm:$0xff]
  %v419 = vld [vmem:[#allocation2 + $0x158] sm:$0xff]
  %v420 = vld [vmem:[#allocation2 + $0x160] sm:$0xff]
  %v421 = vld [vmem:[#allocation2 + $0x168] sm:$0xff]
  %v422 = vld [vmem:[#allocation2 + $0x170] sm:$0xff]
  %v423 = vld [vmem:[#allocation2 + $0x178] sm:$0xff]
  %v424 = vld [vmem:[#allocation2 + $0x180] sm:$0xff]
  %v425 = vld [vmem:[#allocation2 + $0x188] sm:$0xff]
  %v426 = vld [vmem:[#allocation2 + $0x190] sm:$0xff]
  %v427 = vld [vmem:[#allocation2 + $0x198] sm:$0xff]
  %v428 = vld [vmem:[#allocation2 + $0x1a0] sm:$0xff]
  %v429 = vld [vmem:[#allocation2 + $0x1a8] sm:$0xff]
  %v430 = vld [vmem:[#allocation2 + $0x1b0] sm:$0xff]
  %v431 = vld [vmem:[#allocation2 + $0x1b8] sm:$0xff]
  %v432 = vld [vmem:[#allocation2 + $0x1c0] sm:$0xff]
  %v433 = vld [vmem:[#allocation2 + $0x1c8] sm:$0xff]
  %v434 = vld [vmem:[#allocation2 + $0x1d0] sm:$0xff]
  %v435 = vld [vmem:[#allocation2 + $0x1d8] sm:$0xff]
  %vm436 = vcmask 654336
  %v438 = vsel %vm436, %v375, 0
  %440 = vmatpush.msra.mxu0 0.0
  %441 = vmatpush.msra.mxu0 0.0
  %442 = vmatpush.msra.mxu0 0.0
  %443 = vmatpush.msra.mxu0 0.0
  %444 = vmatpush.msra.mxu0 0.0
  %445 = vmatpush.msra.mxu0 0.0
  %446 = vmatpush.msra.mxu0 %v430
  %447 = vmatpush.msra.mxu0 %v424
  %448 = vmatpush.msra.mxu0 %v418
  %449 = vmatpush.msra.mxu0 %v412
  %450 = vmatpush.msra.mxu0 %v406
  %451 = vmatpush.msra.mxu0 %v400
  %452 = vmatpush.msra.mxu0 %v394
  %453 = vmatpush.msra.mxu0 %v388
  %454 = vmatpush.msra.mxu0 %v382
  %455 = vmatpush.msra.mxu0 %v376
  %456 = vmatmul.f32.gmra.mxu0 %v438
  %v457 = vpop.f32.mrf.mxu0
  %v458 = vadd.f32 0.0, %v457
  %459 = vdwg.mxu0
  %460 = vmatpush.msra.mxu0 0.0
  %461 = vmatpush.msra.mxu0 0.0
  %462 = vmatpush.msra.mxu0 0.0
  %463 = vmatpush.msra.mxu0 0.0
  %464 = vmatpush.msra.mxu0 0.0
  %465 = vmatpush.msra.mxu0 0.0
  %466 = vmatpush.msra.mxu0 %v431
  %467 = vmatpush.msra.mxu0 %v425
  %468 = vmatpush.msra.mxu0 %v419
  %469 = vmatpush.msra.mxu0 %v413
  %470 = vmatpush.msra.mxu0 %v407
  %471 = vmatpush.msra.mxu0 %v401
  %472 = vmatpush.msra.mxu0 %v395
  %473 = vmatpush.msra.mxu0 %v389
  %474 = vmatpush.msra.mxu0 %v383
  %475 = vmatpush.msra.mxu0 %v377
  %476 = vmatmul.f32.gmra.mxu0 %v438
  %v477 = vpop.f32.mrf.mxu0
  %v478 = vadd.f32 0.0, %v477
  %479 = vdwg.mxu0
  %480 = vmatpush.msra.mxu0 0.0
  %481 = vmatpush.msra.mxu0 0.0
  %482 = vmatpush.msra.mxu0 0.0
  %483 = vmatpush.msra.mxu0 0.0
  %484 = vmatpush.msra.mxu0 0.0
  %485 = vmatpush.msra.mxu0 0.0
  %486 = vmatpush.msra.mxu0 %v432
  %487 = vmatpush.msra.mxu0 %v426
  %488 = vmatpush.msra.mxu0 %v420
  %489 = vmatpush.msra.mxu0 %v414
  %490 = vmatpush.msra.mxu0 %v408
  %491 = vmatpush.msra.mxu0 %v402
  %492 = vmatpush.msra.mxu0 %v396
  %493 = vmatpush.msra.mxu0 %v390
  %494 = vmatpush.msra.mxu0 %v384
  %495 = vmatpush.msra.mxu0 %v378
  %496 = vmatmul.f32.gmra.mxu0 %v438
  %v497 = vpop.f32.mrf.mxu0
  %v498 = vadd.f32 0.0, %v497
  %499 = vdwg.mxu0
  %500 = vmatpush.msra.mxu0 0.0
  %501 = vmatpush.msra.mxu0 0.0
  %502 = vmatpush.msra.mxu0 0.0
  %503 = vmatpush.msra.mxu0 0.0
  %504 = vmatpush.msra.mxu0 0.0
  %505 = vmatpush.msra.mxu0 0.0
  %506 = vmatpush.msra.mxu0 %v433
  %507 = vmatpush.msra.mxu0 %v427
  %508 = vmatpush.msra.mxu0 %v421
  %509 = vmatpush.msra.mxu0 %v415
  %510 = vmatpush.msra.mxu0 %v409
  %511 = vmatpush.msra.mxu0 %v403
  %512 = vmatpush.msra.mxu0 %v397
  %513 = vmatpush.msra.mxu0 %v391
  %514 = vmatpush.msra.mxu0 %v385
  %515 = vmatpush.msra.mxu0 %v379
  %516 = vmatmul.f32.gmra.mxu0 %v438
  %v517 = vpop.f32.mrf.mxu0
  %v518 = vadd.f32 0.0, %v517
  %519 = vdwg.mxu0
  %520 = vmatpush.msra.mxu0 0.0
  %521 = vmatpush.msra.mxu0 0.0
  %522 = vmatpush.msra.mxu0 0.0
  %523 = vmatpush.msra.mxu0 0.0
  %524 = vmatpush.msra.mxu0 0.0
  %525 = vmatpush.msra.mxu0 0.0
  %526 = vmatpush.msra.mxu0 %v434
  %527 = vmatpush.msra.mxu0 %v428
  %528 = vmatpush.msra.mxu0 %v422
  %529 = vmatpush.msra.mxu0 %v416
  %530 = vmatpush.msra.mxu0 %v410
  %531 = vmatpush.msra.mxu0 %v404
  %532 = vmatpush.msra.mxu0 %v398
  %533 = vmatpush.msra.mxu0 %v392
  %534 = vmatpush.msra.mxu0 %v386
  %535 = vmatpush.msra.mxu0 %v380
  %536 = vmatmul.f32.gmra.mxu0 %v438
  %v537 = vpop.f32.mrf.mxu0
  %v538 = vadd.f32 0.0, %v537
  %539 = vdwg.mxu0
  %540 = vmatpush.msra.mxu0 0.0
  %541 = vmatpush.msra.mxu0 0.0
  %542 = vmatpush.msra.mxu0 0.0
  %543 = vmatpush.msra.mxu0 0.0
  %544 = vmatpush.msra.mxu0 0.0
  %545 = vmatpush.msra.mxu0 0.0
  %546 = vmatpush.msra.mxu0 %v435
  %547 = vmatpush.msra.mxu0 %v429
  %548 = vmatpush.msra.mxu0 %v423
  %549 = vmatpush.msra.mxu0 %v417
  %550 = vmatpush.msra.mxu0 %v411
  %551 = vmatpush.msra.mxu0 %v405
  %552 = vmatpush.msra.mxu0 %v399
  %553 = vmatpush.msra.mxu0 %v393
  %554 = vmatpush.msra.mxu0 %v387
  %555 = vmatpush.msra.mxu0 %v381
  %556 = vmatmul.f32.gmra.mxu0 %v438
  %v557 = vpop.f32.mrf.mxu0
  %v558 = vadd.f32 0.0, %v557
  %559 = vdwg.mxu0
  %v566 = vrot.slane %v478, 4
  %v567 = vrot.slane %v518, 4
  %v568 = vrot.slane %v558, 4
  %vm569 = vcmask 1043456
  %v570 = vsel %vm569, %v458, %v566
  %v571 = vsel %vm569, %v498, %v567
  %v572 = vsel %vm569, %v538, %v568
  %576 = vst [vmem:[%s3] sm:$0xff] %v570
  %577 = vst [vmem:[%s3 + $0x8] sm:$0xff] %v571
  %578 = vst [vmem:[%s3 + $0x10] sm:$0xff] %v572
  // Predicated region
  $region14: #{up_cat_conv.1} parent=0 // pred_check
    _
  $region15: #{up_cat_conv.1} parent=0 // pred_check_branch
    %580 = sbr.rel (0) target = $region17
  $region16: #{up_cat_conv.1} parent=0 // pred_region
    _
  $region17: #{up_cat_conv.1} parent=0 // pred_fallthru
    _
  // Predicated region
  $region18: #{up_cat_conv.1} parent=0 // pred_check
    _
  $region19: #{up_cat_conv.1} parent=0 // pred_check_branch
    %582 = sbr.rel (0) target = $region21
  $region20: #{up_cat_conv.1} parent=0 // pred_region
    _
  $region21: #{up_cat_conv.1} parent=0 // pred_fallthru
    _

</llo_original>
